<compile_context>
chip_gen: v7x
topology: tpu7x:2x2x1
jax: 0.10.0
libtpu: 0.0.40
codegen_flags: <defaults>
</compile_context>

<pallas_src>
import functools

import jax
import jax.numpy as jnp
from jax.experimental import pallas as pl
from jax.experimental.pallas import tpu as pltpu

DIN = 2            # real fc1 input features
HID_PAD = 128      # real hidden: 10, zero-padded to one full lane group
MAX_TILE_B = 4096  # max batch rows per grid step (VMEM-safe on v5e/v6e/v7x)


def mlp_kernel(x_ref, w1_ref, b1_ref, w2_ref, b2_ref, o_ref):
    x = x_ref[...]                                    # (tile, 2) f32
    # fc1 + ReLU on the VPU: two broadcast multiply-adds, no MXU pass.
    h = (x[:, 0:1] * w1_ref[0:1, :]                   # (tile,1)*(1,128)
         + x[:, 1:2] * w1_ref[1:2, :]
         + b1_ref[...])                               # (tile, 128)
    h = jnp.maximum(h, 0.0)
    # fc2 (dout == 1): VPU multiply + XLU lane reduction -> (tile, 1)
    y = jnp.sum(h * w2_ref[...], axis=-1, keepdims=True)
    # Sigmoid on the narrow (tile, 1) result; single-lane output block.
    o_ref[...] = jax.nn.sigmoid(y + b2_ref[...])


def prepare_params(w1, b1, w2, b2):
    """Pad PyTorch-shaped params once (hoisted out of the per-call path).
    w1: (10, 2), b1: (10,), w2: (1, 10), b2: (1,) -> kernel-ready arrays."""
    dhid, _ = w1.shape
    w1p = jnp.zeros((DIN, HID_PAD), jnp.float32).at[:, :dhid].set(
        w1.T.astype(jnp.float32))
    b1p = jnp.zeros((1, HID_PAD), jnp.float32).at[0, :dhid].set(
        b1.astype(jnp.float32))
    w2p = jnp.zeros((1, HID_PAD), jnp.float32).at[0, :dhid].set(
        w2[0].astype(jnp.float32))
    b2p = jnp.asarray(b2, jnp.float32).reshape(1, 1)
    return w1p, b1p, w2p, b2p


def _round_up(n, m):
    return -(-n // m) * m


@functools.partial(jax.jit, static_argnames=("max_tile_b",))
def mlp_forward(x, params, *, max_tile_b=MAX_TILE_B):
    """x: (batch, 2) f32, params: output of prepare_params. Returns (batch, 1)."""
    w1p, b1p, w2p, b2p = params
    batch = x.shape[0]

    # Batch tile: as large as possible (amortize per-grid-step overhead), but
    # keep >=2 grid steps when the batch allows it (v7x megacore sharding).
    tile = min(max_tile_b, max(8, _round_up(pl.cdiv(batch, 2), 8)))
    grid = (pl.cdiv(batch, tile),)

    out = pl.pallas_call(
        mlp_kernel,
        out_shape=jax.ShapeDtypeStruct((batch, 1), jnp.float32),
        grid=grid,
        in_specs=[
            pl.BlockSpec((tile, DIN), lambda i: (i, 0)),      # x: tiled over batch
            pl.BlockSpec((DIN, HID_PAD), lambda i: (0, 0)),   # w1: VMEM resident
            pl.BlockSpec((1, HID_PAD), lambda i: (0, 0)),     # b1
            pl.BlockSpec((1, HID_PAD), lambda i: (0, 0)),     # w2 row
            pl.BlockSpec((1, 1), lambda i: (0, 0)),           # b2 scalar
        ],
        out_specs=pl.BlockSpec((tile, 1), lambda i: (i, 0)),
        compiler_params=pltpu.CompilerParams(
            dimension_semantics=("parallel",),    # batch axis sharded on v7x
            vmem_limit_bytes=32 * 1024 * 1024,    # v5e default (16 MiB) is too small
        ),
    )(x, w1p, b1p, w2p, b2p)
    return out


def reference_forward(x, w1, b1, w2, b2):
    h = jnp.maximum(x @ w1.T + b1, 0.0)
    return jax.nn.sigmoid(h @ w2.T + b2)


if __name__ == "__main__":
    key = jax.random.PRNGKey(0)
    k_x, k_w1, k_b1, k_w2, k_b2 = jax.random.split(key, 5)

    batch = 16   # small, but gives a 2-step grid (tile=8) to exercise tiling
    x = jax.random.normal(k_x, (batch, 2), jnp.float32)
    w1 = jax.random.normal(k_w1, (10, 2), jnp.float32) * 0.5
    b1 = jax.random.normal(k_b1, (10,), jnp.float32) * 0.1
    w2 = jax.random.normal(k_w2, (1, 10), jnp.float32) * 0.5
    b2 = jax.random.normal(k_b2, (1,), jnp.float32) * 0.1

    params = prepare_params(w1, b1, w2, b2)   # padded once, reused every call

    y = mlp_forward(x, params)
    jax.block_until_ready(y)

    y_ref = reference_forward(x, w1, b1, w2, b2)
    assert y.shape == (batch, 1), y.shape
    assert jnp.allclose(y, y_ref, atol=1e-5, rtol=1e-5), (y, y_ref)

    print("KERNEL_OK")
</pallas_src>

<mosaic_0001>
module attributes {stable_mosaic.version = 11 : i64} {
  func.func @mlp_kernel(%arg0: i32, %arg1: memref<8x2xf32, #tpu.memory_space<vmem>>, %arg2: memref<2x128xf32, #tpu.memory_space<vmem>>, %arg3: memref<1x128xf32, #tpu.memory_space<vmem>>, %arg4: memref<1x128xf32, #tpu.memory_space<vmem>>, %arg5: memref<1x1xf32, #tpu.memory_space<vmem>>, %arg6: memref<8x1xf32, #tpu.memory_space<vmem>>) attributes {dimension_semantics = [#tpu.dimension_semantics<parallel>], iteration_bounds = array<i64: 2>, scalar_prefetch = 0 : i64, scratch_operands = 0 : i64, tpu.core_type = #tpu.core_type<tc>, window_params = [{transform_indices = @transform_0, window_bounds = array<i64: 8, 2>}, {pipeline_mode = #tpu.pipeline_mode<synchronous>, transform_indices = @transform_1, window_bounds = array<i64: 2, 128>}, {pipeline_mode = #tpu.pipeline_mode<synchronous>, transform_indices = @transform_2, window_bounds = array<i64: 1, 128>}, {pipeline_mode = #tpu.pipeline_mode<synchronous>, transform_indices = @transform_3, window_bounds = array<i64: 1, 128>}, {pipeline_mode = #tpu.pipeline_mode<synchronous>, transform_indices = @transform_4, window_bounds = array<i64: 1, 1>}, {transform_indices = @transform_5, window_bounds = array<i64: 8, 1>}]} {
    %c0 = arith.constant 0 : index
    %c0_0 = arith.constant 0 : index
    %0 = vector.load %arg1[%c0, %c0_0] : memref<8x2xf32, #tpu.memory_space<vmem>>, vector<8x2xf32>
    %1 = vector.extract_strided_slice %0 {offsets = [0, 0], sizes = [8, 1], strides = [1, 1]} : vector<8x2xf32> to vector<8x1xf32>
    %c0_1 = arith.constant 0 : index
    %c0_2 = arith.constant 0 : index
    %2 = vector.load %arg2[%c0_1, %c0_2] : memref<2x128xf32, #tpu.memory_space<vmem>>, vector<1x128xf32>
    %3 = vector.broadcast %1 : vector<8x1xf32> to vector<8x128xf32>
    %4 = vector.broadcast %2 : vector<1x128xf32> to vector<8x128xf32>
    %5 = arith.mulf %3, %4 : vector<8x128xf32>
    %6 = vector.extract_strided_slice %0 {offsets = [0, 1], sizes = [8, 1], strides = [1, 1]} : vector<8x2xf32> to vector<8x1xf32>
    %c1 = arith.constant 1 : index
    %c0_3 = arith.constant 0 : index
    %7 = vector.load %arg2[%c1, %c0_3] : memref<2x128xf32, #tpu.memory_space<vmem>>, vector<1x128xf32>
    %8 = vector.broadcast %6 : vector<8x1xf32> to vector<8x128xf32>
    %9 = vector.broadcast %7 : vector<1x128xf32> to vector<8x128xf32>
    %10 = arith.mulf %8, %9 : vector<8x128xf32>
    %11 = arith.addf %5, %10 : vector<8x128xf32>
    %c0_4 = arith.constant 0 : index
    %c0_5 = arith.constant 0 : index
    %12 = vector.load %arg3[%c0_4, %c0_5] : memref<1x128xf32, #tpu.memory_space<vmem>>, vector<1x128xf32>
    %13 = vector.broadcast %12 : vector<1x128xf32> to vector<8x128xf32>
    %14 = arith.addf %11, %13 : vector<8x128xf32>
    %cst = arith.constant 0.000000e+00 : f32
    %15 = vector.broadcast %cst : f32 to vector<8x128xf32>
    %16 = arith.maximumf %14, %15 : vector<8x128xf32>
    %c0_6 = arith.constant 0 : index
    %c0_7 = arith.constant 0 : index
    %17 = vector.load %arg4[%c0_6, %c0_7] : memref<1x128xf32, #tpu.memory_space<vmem>>, vector<1x128xf32>
    %18 = vector.broadcast %17 : vector<1x128xf32> to vector<8x128xf32>
    %19 = arith.mulf %16, %18 : vector<8x128xf32>
    %cst_8 = arith.constant dense<0.000000e+00> : vector<8xf32>
    %20 = vector.multi_reduction <add>, %19, %cst_8 [1] : vector<8x128xf32> to vector<8xf32>
    %21 = vector.shape_cast %20 : vector<8xf32> to vector<8x1xf32>
    %c0_9 = arith.constant 0 : index
    %c0_10 = arith.constant 0 : index
    %22 = vector.load %arg5[%c0_9, %c0_10] : memref<1x1xf32, #tpu.memory_space<vmem>>, vector<1x1xf32>
    %23 = vector.broadcast %22 : vector<1x1xf32> to vector<8x1xf32>
    %24 = arith.addf %21, %23 : vector<8x1xf32>
    %25 = arith.negf %24 : vector<8x1xf32>
    %26 = math.exp %25 : vector<8x1xf32>
    %cst_11 = arith.constant 1.000000e+00 : f32
    %27 = vector.broadcast %cst_11 : f32 to vector<8x1xf32>
    %28 = arith.addf %27, %26 : vector<8x1xf32>
    %29 = arith.divf %27, %28 : vector<8x1xf32>
    %c0_12 = arith.constant 0 : index
    %c0_13 = arith.constant 0 : index
    %30 = vector.load %arg6[%c0_12, %c0_13] : memref<8x1xf32, #tpu.memory_space<vmem>>, vector<8x1xf32>
    tpu.vector_store %arg6[%c0_12, %c0_13], %29 {strides = array<i32>} : memref<8x1xf32, #tpu.memory_space<vmem>>, vector<8x1xf32>,
    return
  }
  func.func @transform_0(%arg0: i32) -> (i32, i32) {
    %c0_i32 = arith.constant 0 : i32
    %c0_i32_0 = arith.constant 0 : i32
    return %arg0, %c0_i32 : i32, i32
  }
  func.func @transform_1(%arg0: i32) -> (i32, i32) {
    %c0_i32 = arith.constant 0 : i32
    %c0_i32_0 = arith.constant 0 : i32
    %c0_i32_1 = arith.constant 0 : i32
    return %c0_i32, %c0_i32_0 : i32, i32
  }
  func.func @transform_2(%arg0: i32) -> (i32, i32) {
    %c0_i32 = arith.constant 0 : i32
    %c0_i32_0 = arith.constant 0 : i32
    %c0_i32_1 = arith.constant 0 : i32
    return %c0_i32, %c0_i32_0 : i32, i32
  }
  func.func @transform_3(%arg0: i32) -> (i32, i32) {
    %c0_i32 = arith.constant 0 : i32
    %c0_i32_0 = arith.constant 0 : i32
    %c0_i32_1 = arith.constant 0 : i32
    return %c0_i32, %c0_i32_0 : i32, i32
  }
  func.func @transform_4(%arg0: i32) -> (i32, i32) {
    %c0_i32 = arith.constant 0 : i32
    %c0_i32_0 = arith.constant 0 : i32
    %c0_i32_1 = arith.constant 0 : i32
    return %c0_i32, %c0_i32_0 : i32, i32
  }
  func.func @transform_5(%arg0: i32) -> (i32, i32) {
    %c0_i32 = arith.constant 0 : i32
    %c0_i32_0 = arith.constant 0 : i32
    return %arg0, %c0_i32 : i32, i32
  }
}

</mosaic_0001>

<llo_original>
// kernel: mlp_forward.1
$region0: #{mlp_forward.1}
  #allocation0 [shape = 'u32[]', space=smem, size = 0x4, offset = 0x4, fixed_abs, tag = 'smem constant byte address 0x4 - core index']
  #allocation1 [shape = 'u32[144,128]{1,0:T(1,128)}', space=vmem, size = 0x12000, scoped, tag = 'internal scratch']
  #allocation2 [shape = 'f32[1,1]{1,0:T(1,128)S(1)}', space=vmem, size = 0x200, scoped, tag = 'scoped memory for mlp_forward.1']
  %s0 = inlined_call_operand.vmem [shape: f32[16,2], index: 0, kind: input, shape index: {}]
  %s1 = inlined_call_operand.vmem [shape: f32[2,128], index: 1, kind: input, shape index: {}]
  %s2 = inlined_call_operand.vmem [shape: f32[1,128], index: 2, kind: input, shape index: {}]
  %s3 = inlined_call_operand.vmem [shape: f32[1,128], index: 3, kind: input, shape index: {}]
  %s4 = inlined_call_operand.<no memory space> [shape: f32[1,1], index: 4, kind: input, shape index: {}]
  %s5 = inlined_call_operand.vmem [shape: f32[16,1], index: 5, kind: output, shape index: {}]
  %s6 = sld [smem:[#allocation0]]
  $region53: #{mlp_forward.1} parent=0
    _
  %s8 = ssub.s32 1, %s6
  %s9 = scalar_select 0, %s8, %s6
  %v10 = vstv %s4
  %11 = vst [vmem:[#allocation2] sm:$0x1] %v10
  loop: start=0, step=1, limit=4
  $region2: #{mlp_forward.1} parent=0 // loop_pre_header
    _
  $region3: #{mlp_forward.1} parent=0 // loop_header
    %s13 = sphi 0, %s17
    %p14 = scmp.ge.s32.totalorder %s13, 4
    %s23 = sphi 0, %s25
    %s26 = sphi 0, %s23
    %s27 = sphi 0, %s26
    %s43 = sphi 0, %s27
    %s47 = sphi 0, %s47
    %s49 = sphi 0, %s47
    %s50 = sphi 0, %s49
    %s64 = sphi 0, %s50
    %s68 = sphi 0, %s68
    %s70 = sphi 0, %s68
    %s71 = sphi 0, %s70
    %s85 = sphi 0, %s71
    %s89 = sphi 0, %s89
    %s91 = sphi 0, %s89
    %s92 = sphi 0, %s91
    %s106 = sphi 0, %s92
    %s110 = sphi 0, %s110
    %s112 = sphi 0, %s110
    %s113 = sphi 0, %s112
    %s127 = sphi 0, %s113
    %s133 = sphi 0, %s135
    %s136 = sphi 0, %s133
    %s137 = sphi 0, %s136
    %s153 = sphi 0, %s137
  $region4: #{mlp_forward.1} parent=0 // loop_header_branch
    %16 = sbr.rel (%p14) target = $region8
  $region5: #{mlp_forward.1} parent=0 // loop_body
    %s18 = ssub.s32 %s13, 1
    %s19 = ssub.s32 %s13, 2
    %s20 = sadd.s32 %s13, 1
    %s21 = ssub.s32 %s13, %s20
    %p22 = scmp.eq.s32.totalorder %s21, 0
    %s24 = sadd.s32 %s23, 1
    %s25 = scalar_select %p22, %s23, %s24
    %p28 = pneg %p22
    %p29 = scmp.eq.s32.totalorder %s13, 1
    %p30 = por %p28, %p29
    %p31 = scmp.ne.s32.totalorder %s23, %s26
    %p32 = scmp.eq.s32.totalorder %s13, 0
    %p33 = por %p31, %p32
    %p34 = scmp.ne.s32.totalorder %s23, %s26
    %p35 = scmp.eq.s32.totalorder %s18, 1
    %p36 = por %p34, %p35
    %p37 = scmp.ne.s32.totalorder %s26, %s27
    %p38 = scmp.eq.s32.totalorder %s18, 0
    %p39 = por %p37, %p38
    %p40 = scmp.ne.s32.totalorder %s26, %s27
    %p41 = scmp.eq.s32.totalorder %s19, 1
    %p42 = por %p40, %p41
    %p44 = scmp.ne.s32.totalorder %s27, %s43
    %p45 = scmp.eq.s32.totalorder %s19, 0
    %p46 = por %p44, %p45
    %s48 = sadd.s32 %s47, 1
    %p51 = scmp.eq.s32.totalorder %s13, 1
    %p52 = scmp.ne.s32.totalorder %s47, %s49
    %p53 = scmp.eq.s32.totalorder %s13, 0
    %p54 = por %p52, %p53
    %p55 = scmp.ne.s32.totalorder %s47, %s49
    %p56 = scmp.eq.s32.totalorder %s18, 1
    %p57 = por %p55, %p56
    %p58 = scmp.ne.s32.totalorder %s49, %s50
    %p59 = scmp.eq.s32.totalorder %s18, 0
    %p60 = por %p58, %p59
    %p61 = scmp.ne.s32.totalorder %s49, %s50
    %p62 = scmp.eq.s32.totalorder %s19, 1
    %p63 = por %p61, %p62
    %p65 = scmp.ne.s32.totalorder %s50, %s64
    %p66 = scmp.eq.s32.totalorder %s19, 0
    %p67 = por %p65, %p66
    %s69 = sadd.s32 %s68, 1
    %p72 = scmp.eq.s32.totalorder %s13, 1
    %p73 = scmp.ne.s32.totalorder %s68, %s70
    %p74 = scmp.eq.s32.totalorder %s13, 0
    %p75 = por %p73, %p74
    %p76 = scmp.ne.s32.totalorder %s68, %s70
    %p77 = scmp.eq.s32.totalorder %s18, 1
    %p78 = por %p76, %p77
    %p79 = scmp.ne.s32.totalorder %s70, %s71
    %p80 = scmp.eq.s32.totalorder %s18, 0
    %p81 = por %p79, %p80
    %p82 = scmp.ne.s32.totalorder %s70, %s71
    %p83 = scmp.eq.s32.totalorder %s19, 1
    %p84 = por %p82, %p83
    %p86 = scmp.ne.s32.totalorder %s71, %s85
    %p87 = scmp.eq.s32.totalorder %s19, 0
    %p88 = por %p86, %p87
    %s90 = sadd.s32 %s89, 1
    %p93 = scmp.eq.s32.totalorder %s13, 1
    %p94 = scmp.ne.s32.totalorder %s89, %s91
    %p95 = scmp.eq.s32.totalorder %s13, 0
    %p96 = por %p94, %p95
    %p97 = scmp.ne.s32.totalorder %s89, %s91
    %p98 = scmp.eq.s32.totalorder %s18, 1
    %p99 = por %p97, %p98
    %p100 = scmp.ne.s32.totalorder %s91, %s92
    %p101 = scmp.eq.s32.totalorder %s18, 0
    %p102 = por %p100, %p101
    %p103 = scmp.ne.s32.totalorder %s91, %s92
    %p104 = scmp.eq.s32.totalorder %s19, 1
    %p105 = por %p103, %p104
    %p107 = scmp.ne.s32.totalorder %s92, %s106
    %p108 = scmp.eq.s32.totalorder %s19, 0
    %p109 = por %p107, %p108
    %s111 = sadd.s32 %s110, 1
    %p114 = scmp.eq.s32.totalorder %s13, 1
    %p115 = scmp.ne.s32.totalorder %s110, %s112
    %p116 = scmp.eq.s32.totalorder %s13, 0
    %p117 = por %p115, %p116
    %p118 = scmp.ne.s32.totalorder %s110, %s112
    %p119 = scmp.eq.s32.totalorder %s18, 1
    %p120 = por %p118, %p119
    %p121 = scmp.ne.s32.totalorder %s112, %s113
    %p122 = scmp.eq.s32.totalorder %s18, 0
    %p123 = por %p121, %p122
    %p124 = scmp.ne.s32.totalorder %s112, %s113
    %p125 = scmp.eq.s32.totalorder %s19, 1
    %p126 = por %p124, %p125
    %p128 = scmp.ne.s32.totalorder %s113, %s127
    %p129 = scmp.eq.s32.totalorder %s19, 0
    %p130 = por %p128, %p129
    %s131 = ssub.s32 %s13, %s20
    %p132 = scmp.eq.s32.totalorder %s131, 0
    %s134 = sadd.s32 %s133, 1
    %s135 = scalar_select %p132, %s133, %s134
    %p138 = pneg %p132
    %p139 = scmp.eq.s32.totalorder %s13, 1
    %p140 = por %p138, %p139
    %p141 = scmp.ne.s32.totalorder %s133, %s136
    %p142 = scmp.eq.s32.totalorder %s13, 0
    %p143 = por %p141, %p142
    %p144 = scmp.ne.s32.totalorder %s133, %s136
    %p145 = scmp.eq.s32.totalorder %s18, 1
    %p146 = por %p144, %p145
    %p147 = scmp.ne.s32.totalorder %s136, %s137
    %p148 = scmp.eq.s32.totalorder %s18, 0
    %p149 = por %p147, %p148
    %p150 = scmp.ne.s32.totalorder %s136, %s137
    %p151 = scmp.eq.s32.totalorder %s19, 1
    %p152 = por %p150, %p151
    %p154 = scmp.ne.s32.totalorder %s137, %s153
    %p155 = scmp.eq.s32.totalorder %s19, 0
    %p156 = por %p154, %p155
    %p157 = scmp.le.s32.totalorder 1, %s13
    %p158 = scmp.lt.s32.totalorder %s13, 3
    %p159 = pnand %p157, %p158
    %p160 = pneg %p159
    // Predicated region
    $region9: #{mlp_forward.1} parent=5 // pred_check
      _
    $region10: #{mlp_forward.1} parent=5 // pred_check_branch
      %162 = sbr.rel (%p159) target = $region12
    $region11: #{mlp_forward.1} parent=5 // pred_region
      %s163 = ssub.s32 %s13, 1
      // Predicated region
      $region13: #{mlp_forward.1} parent=11 // pred_check
        %p164 = pneg %p60
      $region14: #{mlp_forward.1} parent=11 // pred_check_branch
        %166 = sbr.rel (%p164) target = $region16
      $region15: #{mlp_forward.1} parent=11 // pred_region
        _
      $region16: #{mlp_forward.1} parent=11 // pred_fallthru
        _
      // Predicated region
      $region17: #{mlp_forward.1} parent=11 // pred_check
        %p167 = pneg %p81
      $region18: #{mlp_forward.1} parent=11 // pred_check_branch
        %169 = sbr.rel (%p167) target = $region20
      $region19: #{mlp_forward.1} parent=11 // pred_region
        _
      $region20: #{mlp_forward.1} parent=11 // pred_fallthru
        _
      // Predicated region
      $region21: #{mlp_forward.1} parent=11 // pred_check
        %p170 = pneg %p102
      $region22: #{mlp_forward.1} parent=11 // pred_check_branch
        %172 = sbr.rel (%p170) target = $region24
      $region23: #{mlp_forward.1} parent=11 // pred_region
        _
      $region24: #{mlp_forward.1} parent=11 // pred_fallthru
        _
      // Predicated region
      $region25: #{mlp_forward.1} parent=11 // pred_check
        %p173 = pneg %p123
      $region26: #{mlp_forward.1} parent=11 // pred_check_branch
        %175 = sbr.rel (%p173) target = $region28
      $region27: #{mlp_forward.1} parent=11 // pred_region
        _
      $region28: #{mlp_forward.1} parent=11 // pred_fallthru
        _
    $region12: #{mlp_forward.1} parent=5 // pred_fallthru
      _
    %p176 = scmp.lt.s32.totalorder %s13, 2
    // Predicated region
    $region29: #{mlp_forward.1} parent=5 // pred_check
      %p177 = pneg %p176
    $region30: #{mlp_forward.1} parent=5 // pred_check_branch
      %179 = sbr.rel (%p177) target = $region32
    $region31: #{mlp_forward.1} parent=5 // pred_region
      // Predicated region
      $region33: #{mlp_forward.1} parent=31 // pred_check
        %p180 = pneg %p33
      $region34: #{mlp_forward.1} parent=31 // pred_check_branch
        %182 = sbr.rel (%p180) target = $region36
      $region35: #{mlp_forward.1} parent=31 // pred_region
        %p183 = scmp.lt.s32.totalorder %s13, 1
        %s184 = scalar_select %p183, %s13, 1
        %s185 = smul.addr %s184, 8
        %s186 = scalar_lea.vmem %s0, %s185
      $region36: #{mlp_forward.1} parent=31 // pred_fallthru
        _
    $region32: #{mlp_forward.1} parent=5 // pred_fallthru
      _
    %p187 = scmp.le.s32.totalorder 1, %s13
    %p188 = scmp.lt.s32.totalorder %s13, 3
    %p189 = pnand %p187, %p188
    %p190 = pneg %p189
    // Predicated region
    $region37: #{mlp_forward.1} parent=5 // pred_check
      _
    $region38: #{mlp_forward.1} parent=5 // pred_check_branch
      %192 = sbr.rel (%p189) target = $region40
    $region39: #{mlp_forward.1} parent=5 // pred_region
      %s193 = ssub.s32 %s13, 1
      %p194 = scmp.lt.s32.totalorder %s18, 1
      %s195 = scalar_select %p194, %s18, 1
      %s196 = smul.addr %s195, 8
      %s197 = scalar_lea.vmem %s0, %s196
      %p198 = pneg %p39
      %p199 = pneg %p36
      %p200 = pneg %p60
      %p201 = pneg %p57
      %p202 = pneg %p81
      %p203 = pneg %p78
      %p204 = pneg %p102
      %p205 = pneg %p99
      %p206 = pneg %p123
      %p207 = pneg %p120
      %p208 = pneg %p149
      %p209 = pneg %p146
      %p210 = scmp.lt.s32.totalorder %s18, 1
      %s211 = scalar_select %p210, %s18, 1
      %s212 = smul.addr %s211, 8
      %s213 = scalar_lea.vmem %s5, %s212
      %p214 = scmp.lt.s32.totalorder %s18, 1
      %s215 = scalar_select %p214, %s18, 1
      %s216 = smul.addr %s215, 8
      %s217 = scalar_lea.vmem %s0, %s216
      %p218 = scmp.lt.s32.totalorder %s18, 1
      %s219 = scalar_select %p218, %s18, 1
      %s220 = smul.addr %s219, 8
      %s221 = scalar_lea.vmem %s5, %s220
      %v222 = vld [vmem:[%s217] sm:$0xff]
      %v223 = vld [vmem:[%s1] sm:$0x1]
      %225 = vset.pattern.permute.xlu0 0
      %226 = vperm.xlu0 %225, %v222
      %v227 = vpop.permute.xlu0 %226
      %v229 = vlaneseq
      %v230 = vshrl.u32 %v229, 7
      %v231 = vsub.s32 0, %v230
      %v232 = vrot.slane %v223, %v231
      %v233 = vmul.f32 %v227, %v232
      %v234 = vld [vmem:[%s1 + $0x1] sm:$0x1]
      %235 = vset.pattern.permute.xlu0 1
      %236 = vperm.xlu0 %235, %v222
      %v237 = vpop.permute.xlu0 %236
      %v239 = vlaneseq
      %v240 = vshrl.u32 %v239, 7
      %v241 = vsub.s32 0, %v240
      %v242 = vrot.slane %v234, %v241
      %v243 = vmul.f32 %v237, %v242
      %v244 = vadd.f32 %v233, %v243
      %v245 = vld [vmem:[%s2] sm:$0x1]
      %v247 = vlaneseq
      %v248 = vshrl.u32 %v247, 7
      %v249 = vsub.s32 0, %v248
      %v250 = vrot.slane %v245, %v249
      %v252 = vadd.f32 %v244, %v250
      %v253 = vmax.f32 %v252, 0.0
      %v254 = vld [vmem:[%s3] sm:$0x1]
      %v256 = vlaneseq
      %v257 = vshrl.u32 %v256, 7
      %v258 = vsub.s32 0, %v257
      %v259 = vrot.slane %v254, %v258
      %v261 = vmul.f32 %v253, %v259
      %262 = vadd.xlane.f32.xlu0 %v261
      %v263 = vpop.xlane.xlu0 %262
      %v264 = vld [vmem:[#allocation2] sm:$0x1]
      %v266 = vlaneseq
      %v267 = vshrl.u32 %v266, 7
      %v268 = vsub.s32 0, %v267
      %v269 = vrot.slane %v264, %v268
      %v271 = vadd.f32 %v263, %v269
      %v272 = vxor.u32 %v271, 2147483648
      %v273 = vmul.f32 %v272, 1.442695
      %v274 = vpow.pop %v273
      %v275 = vadd.f32 %v274, 1.0
      %v276 = vrcp.pop %v275
      %v277 = vmul.f32 1.0, %v276
      %vm278 = vcmask 7168
      %279 = vst.msk [vmem:[%s221] sm:$0xff] %vm278, %v277
      %p280 = scmp.lt.s32.totalorder %s18, 1
      %s281 = scalar_select %p280, %s18, 1
      %s282 = smul.addr %s281, 8
      %s283 = scalar_lea.vmem %s5, %s282
      // Predicated region
      $region41: #{mlp_forward.1} parent=39 // pred_check
        %p284 = pneg %p146
      $region42: #{mlp_forward.1} parent=39 // pred_check_branch
        %286 = sbr.rel (%p284) target = $region44
      $region43: #{mlp_forward.1} parent=39 // pred_region
        _
      $region44: #{mlp_forward.1} parent=39 // pred_fallthru
        _
    $region40: #{mlp_forward.1} parent=5 // pred_fallthru
      _
    %p287 = scmp.le.s32.totalorder 2, %s13
    // Predicated region
    $region45: #{mlp_forward.1} parent=5 // pred_check
      %p288 = pneg %p287
    $region46: #{mlp_forward.1} parent=5 // pred_check_branch
      %290 = sbr.rel (%p288) target = $region48
    $region47: #{mlp_forward.1} parent=5 // pred_region
      %s291 = ssub.s32 %s13, 2
      // Predicated region
      $region49: #{mlp_forward.1} parent=47 // pred_check
        %p292 = pneg %p152
      $region50: #{mlp_forward.1} parent=47 // pred_check_branch
        %294 = sbr.rel (%p292) target = $region52
      $region51: #{mlp_forward.1} parent=47 // pred_region
        %p295 = scmp.lt.s32.totalorder %s19, 1
        %s296 = scalar_select %p295, %s19, 1
        %s297 = smul.addr %s296, 8
        %s298 = scalar_lea.vmem %s5, %s297
      $region52: #{mlp_forward.1} parent=47 // pred_fallthru
        _
    $region48: #{mlp_forward.1} parent=5 // pred_fallthru
      _
  $region6: #{mlp_forward.1} parent=0 // loop_footer
    %s17 = sadd.s32 1, %s13
  $region7: #{mlp_forward.1} parent=0 // loop_footer_branch
    %12 = sbr.rel target = $region3
  $region8: #{mlp_forward.1} parent=0 // loop_exit
    _

</llo_original>
